<compile_context>
chip_gen: v5e
topology: v5e:2x2
jax: 0.10.0
libtpu: 0.0.40
codegen_flags: <defaults>
</compile_context>

<pallas_src>
import jax
import jax.numpy as jnp
from jax import lax
from jax.experimental import pallas as pl
from jax.experimental.pallas import tpu as pltpu

FEATURE_DIM = 150
LABEL_DIM = 159
NUM_PAIRWISE = 16


def _round_up(n, m):
    return ((n + m - 1) // m) * m


def _choose_block_b(B, cap=1024):
    """Pick the batch tile: as large as possible (HBM-bound kernel), multiple
    of 8 sublanes (or == B), and >= 2 grid steps once B is big enough that
    splitting across v7x's two TensorCores pays off."""
    cap = max(8, (cap // 8) * 8)
    if B <= 256:
        return B                      # single block; block == full dim is legal
    # At least two grid steps so the parallel batch axis uses both TCs on v7x.
    half = _round_up(-(-B // 2), 8)
    return min(cap, half)


def energy_net_kernel(x_ref, y_ref, w_ref, c1_ref, bc_ref,
                      e_global_ref, feat_probs_ref):
    # x_ref: (bb, F)   y_ref: (bb, L)
    # w_ref: (F, L) f32  (pre-transposed linear_wt.weight)
    # c1_ref: (L, P) f32 (pre-transposed C1.weight)
    # bc_ref: (2, P) f32 -- row 0 = C1.bias, row 1 = c2.weight
    x = x_ref[...].astype(jnp.float32)                        # (bb, F)
    y = y_ref[...].astype(jnp.float32)                        # (bb, L)

    # negative_logits = linear_wt(x) = x @ W^T  (W^T already materialized once
    # in the wrapper -> plain MXU contraction, f32 accumulation).
    neg_logits = jnp.dot(x, w_ref[...],
                         preferred_element_type=jnp.float32)  # (bb, L)

    # feat_probs = sigmoid(-negative_logits); compute in f32, cast on store.
    feat_probs_ref[...] = jax.nn.sigmoid(-neg_logits).astype(feat_probs_ref.dtype)

    # e_local = sum(negative_logits * y, dim=1)
    e_local = jnp.sum(neg_logits * y, axis=1, keepdims=True)  # (bb, 1)

    # e_label = c2(softplus(C1(y)))
    h = jnp.dot(y, c1_ref[...],
                preferred_element_type=jnp.float32)           # (bb, P)
    sp = jax.nn.softplus(h + bc_ref[0:1, :])                  # (bb, P) f32
    e_label = jnp.sum(sp * bc_ref[1:2, :], axis=1, keepdims=True)  # (bb, 1)

    # e_global = e_label + e_local
    e_global_ref[...] = e_label + e_local


def energy_net_forward(x, y, linear_wt_w, c1_w, c1_b, c2_w, *,
                       block_b=1024, feat_probs_dtype=jnp.float32):
    """x: (B,150)  y: (B,159)
       linear_wt_w: (159,150)  c1_w: (16,159)  c1_b: (16,)  c2_w: (1,16)
       Returns (e_global (B,), feat_probs (B,159))."""
    B = x.shape[0]
    # Accept floating inputs as-is (e.g. bf16 from an upstream producer); only
    # force f32 for non-float inputs.  The in-kernel astype is a no-op for f32.
    if not jnp.issubdtype(jnp.asarray(x).dtype, jnp.floating):
        x = jnp.asarray(x, jnp.float32)
    if not jnp.issubdtype(jnp.asarray(y).dtype, jnp.floating):
        y = jnp.asarray(y, jnp.float32)

    # One-time (tiny) transposes to (in, out) layout; done outside the kernel
    # so no per-grid-step relayout can appear in the body.
    w_t = jnp.asarray(linear_wt_w, jnp.float32).T             # (F, L)
    c1_t = jnp.asarray(c1_w, jnp.float32).T                   # (L, P)
    bias_c2 = jnp.stack(
        [jnp.asarray(c1_b, jnp.float32).reshape(NUM_PAIRWISE),
         jnp.asarray(c2_w, jnp.float32).reshape(NUM_PAIRWISE)],
        axis=0)                                               # (2, P)

    bb = _choose_block_b(B, block_b)
    grid = (pl.cdiv(B, bb),)   # ragged final block handled by Pallas masking

    e_global, feat_probs = pl.pallas_call(
        energy_net_kernel,
        out_shape=(
            jax.ShapeDtypeStruct((B, 1), jnp.float32),
            jax.ShapeDtypeStruct((B, LABEL_DIM), feat_probs_dtype),
        ),
        grid=grid,
        in_specs=[
            pl.BlockSpec((bb, FEATURE_DIM), lambda i: (i, 0)),          # x
            pl.BlockSpec((bb, LABEL_DIM), lambda i: (i, 0)),            # y
            pl.BlockSpec((FEATURE_DIM, LABEL_DIM), lambda i: (0, 0)),   # W^T (resident)
            pl.BlockSpec((LABEL_DIM, NUM_PAIRWISE), lambda i: (0, 0)),  # C1^T (resident)
            pl.BlockSpec((2, NUM_PAIRWISE), lambda i: (0, 0)),          # [C1.b; c2.w]
        ],
        out_specs=(
            pl.BlockSpec((bb, 1), lambda i: (i, 0)),
            pl.BlockSpec((bb, LABEL_DIM), lambda i: (i, 0)),
        ),
        compiler_params=pltpu.CompilerParams(
            dimension_semantics=("parallel",)),
    )(x, y, w_t, c1_t, bias_c2)

    return e_global.reshape(-1), feat_probs


def _reference(x, y, w, c1_w, c1_b, c2_w):
    """Pure-JAX reference of the PyTorch forward (f32, highest precision)."""
    neg_logits = jnp.dot(x, w.T, precision=lax.Precision.HIGHEST)
    feat_probs = jax.nn.sigmoid(-neg_logits)
    e_local = jnp.sum(neg_logits * y, axis=1)
    e_label = jax.nn.softplus(
        jnp.dot(y, c1_w.T, precision=lax.Precision.HIGHEST) + c1_b)
    e_label = jnp.dot(e_label, c2_w.T, precision=lax.Precision.HIGHEST)
    return e_label.reshape(-1) + e_local, feat_probs


if __name__ == "__main__":
    key = jax.random.PRNGKey(0)
    k_x, k_y, k_w, k_c1w, k_c1b, k_c2 = jax.random.split(key, 6)

    # Parameters in the nn.Module's stored (out_features, in_features) layout.
    linear_wt_w = jax.random.normal(k_w, (LABEL_DIM, FEATURE_DIM), jnp.float32) * 0.05
    c1_w = jax.random.normal(k_c1w, (NUM_PAIRWISE, LABEL_DIM), jnp.float32) * 0.05
    c1_b = jax.random.normal(k_c1b, (NUM_PAIRWISE,), jnp.float32) * 0.05
    c2_w = jax.random.normal(k_c2, (1, NUM_PAIRWISE), jnp.float32) * 0.05

    fwd = jax.jit(energy_net_forward)

    # Small primary case (B=8, single block) + a ragged multi-step case (B=300,
    # two grid steps with a masked tail) to exercise the no-pad path.
    for B in (8, 300):
        kx, ky = jax.random.fold_in(k_x, B), jax.random.fold_in(k_y, B)
        x = jax.random.normal(kx, (B, FEATURE_DIM), jnp.float32)
        # y in the SPEN setting is a (soft) label vector in [0, 1]
        y = jax.random.uniform(ky, (B, LABEL_DIM), jnp.float32)

        e_global, feat_probs = fwd(x, y, linear_wt_w, c1_w, c1_b, c2_w)
        jax.block_until_ready((e_global, feat_probs))

        assert e_global.shape == (B,)
        assert feat_probs.shape == (B, LABEL_DIM)

        e_ref, p_ref = _reference(x, y, linear_wt_w, c1_w, c1_b, c2_w)
        assert jnp.allclose(e_global, e_ref, atol=2e-2, rtol=2e-3), (
            float(jnp.max(jnp.abs(e_global - e_ref))))
        assert jnp.allclose(feat_probs, p_ref, atol=2e-3, rtol=1e-3), (
            float(jnp.max(jnp.abs(feat_probs - p_ref))))

    print("KERNEL_OK")
</pallas_src>

<mosaic_0001>
module attributes {stable_mosaic.version = 11 : i64} {
  func.func @energy_net_kernel(%arg0: i32, %arg1: memref<8x150xf32, #tpu.memory_space<vmem>>, %arg2: memref<8x159xf32, #tpu.memory_space<vmem>>, %arg3: memref<150x159xf32, #tpu.memory_space<vmem>>, %arg4: memref<159x16xf32, #tpu.memory_space<vmem>>, %arg5: memref<2x16xf32, #tpu.memory_space<vmem>>, %arg6: memref<8x1xf32, #tpu.memory_space<vmem>>, %arg7: memref<8x159xf32, #tpu.memory_space<vmem>>) attributes {dimension_semantics = [#tpu.dimension_semantics<parallel>], iteration_bounds = array<i64: 1>, scalar_prefetch = 0 : i64, scratch_operands = 0 : i64, tpu.core_type = #tpu.core_type<tc>, window_params = [{transform_indices = @transform_0, window_bounds = array<i64: 8, 150>}, {transform_indices = @transform_1, window_bounds = array<i64: 8, 159>}, {pipeline_mode = #tpu.pipeline_mode<synchronous>, transform_indices = @transform_2, window_bounds = array<i64: 150, 159>}, {pipeline_mode = #tpu.pipeline_mode<synchronous>, transform_indices = @transform_3, window_bounds = array<i64: 159, 16>}, {pipeline_mode = #tpu.pipeline_mode<synchronous>, transform_indices = @transform_4, window_bounds = array<i64: 2, 16>}, {transform_indices = @transform_5, window_bounds = array<i64: 8, 1>}, {transform_indices = @transform_6, window_bounds = array<i64: 8, 159>}]} {
    %c0 = arith.constant 0 : index
    %c0_0 = arith.constant 0 : index
    %0 = vector.load %arg1[%c0, %c0_0] : memref<8x150xf32, #tpu.memory_space<vmem>>, vector<8x150xf32>
    %c0_1 = arith.constant 0 : index
    %c0_2 = arith.constant 0 : index
    %1 = vector.load %arg2[%c0_1, %c0_2] : memref<8x159xf32, #tpu.memory_space<vmem>>, vector<8x159xf32>
    %c0_3 = arith.constant 0 : index
    %c0_4 = arith.constant 0 : index
    %2 = vector.load %arg3[%c0_3, %c0_4] : memref<150x159xf32, #tpu.memory_space<vmem>>, vector<150x159xf32>
    %cst = arith.constant dense<0.000000e+00> : vector<8x159xf32>
    %3 = tpu.matmul %0, %2, %cst {dimension_numbers = #tpu.dot_dimension_numbers<[1], [0], [0], [1], [0, 0, 1, 1], [], []>} : vector<8x150xf32>, vector<150x159xf32>, vector<8x159xf32> -> vector<8x159xf32>
    %cst_5 = arith.constant 0.000000e+00 : f32
    %4 = vector.broadcast %cst_5 : f32 to vector<8x159xf32>
    %5 = arith.subf %4, %3 : vector<8x159xf32>
    %6 = arith.negf %5 : vector<8x159xf32>
    %7 = math.exp %6 : vector<8x159xf32>
    %cst_6 = arith.constant 1.000000e+00 : f32
    %8 = vector.broadcast %cst_6 : f32 to vector<8x159xf32>
    %9 = arith.addf %8, %7 : vector<8x159xf32>
    %10 = arith.divf %8, %9 : vector<8x159xf32>
    %c0_7 = arith.constant 0 : index
    %c0_8 = arith.constant 0 : index
    %11 = vector.load %arg7[%c0_7, %c0_8] : memref<8x159xf32, #tpu.memory_space<vmem>>, vector<8x159xf32>
    tpu.vector_store %arg7[%c0_7, %c0_8], %10 {strides = array<i32>} : memref<8x159xf32, #tpu.memory_space<vmem>>, vector<8x159xf32>,
    %12 = arith.mulf %3, %1 : vector<8x159xf32>
    %cst_9 = arith.constant dense<0.000000e+00> : vector<8xf32>
    %13 = vector.multi_reduction <add>, %12, %cst_9 [1] : vector<8x159xf32> to vector<8xf32>
    %14 = vector.shape_cast %13 : vector<8xf32> to vector<8x1xf32>
    %c0_10 = arith.constant 0 : index
    %c0_11 = arith.constant 0 : index
    %15 = vector.load %arg4[%c0_10, %c0_11] : memref<159x16xf32, #tpu.memory_space<vmem>>, vector<159x16xf32>
    %cst_12 = arith.constant dense<0.000000e+00> : vector<8x16xf32>
    %16 = tpu.matmul %1, %15, %cst_12 {dimension_numbers = #tpu.dot_dimension_numbers<[1], [0], [0], [1], [0, 0, 1, 1], [], []>} : vector<8x159xf32>, vector<159x16xf32>, vector<8x16xf32> -> vector<8x16xf32>
    %c0_13 = arith.constant 0 : index
    %c0_14 = arith.constant 0 : index
    %17 = vector.load %arg5[%c0_13, %c0_14] : memref<2x16xf32, #tpu.memory_space<vmem>>, vector<1x16xf32>
    %18 = vector.broadcast %17 : vector<1x16xf32> to vector<8x16xf32>
    %19 = arith.addf %16, %18 : vector<8x16xf32>
    %cst_15 = arith.constant 0.000000e+00 : f32
    %20 = vector.broadcast %cst_15 : f32 to vector<8x16xf32>
    %21 = arith.maximumf %19, %20 : vector<8x16xf32>
    %22 = vector.broadcast %cst_15 : f32 to vector<8x16xf32>
    %23 = arith.subf %19, %22 : vector<8x16xf32>
    %24 = arith.cmpf one, %23, %23 : vector<8x16xf32>
    %25 = vector.broadcast %cst_15 : f32 to vector<8x16xf32>
    %26 = arith.addf %19, %25 : vector<8x16xf32>
    %27 = math.absf %23 : vector<8x16xf32>
    %cst_16 = arith.constant 0.000000e+00 : f32
    %28 = vector.broadcast %cst_16 : f32 to vector<8x16xf32>
    %29 = arith.subf %28, %27 : vector<8x16xf32>
    %30 = math.exp %29 : vector<8x16xf32>
    %31 = math.log1p %30 : vector<8x16xf32>
    %32 = arith.addf %21, %31 : vector<8x16xf32>
    %33 = arith.select %24, %26, %32 : vector<8x16xi1>, vector<8x16xf32>
    %c1 = arith.constant 1 : index
    %c0_17 = arith.constant 0 : index
    %34 = vector.load %arg5[%c1, %c0_17] : memref<2x16xf32, #tpu.memory_space<vmem>>, vector<1x16xf32>
    %35 = vector.broadcast %34 : vector<1x16xf32> to vector<8x16xf32>
    %36 = arith.mulf %33, %35 : vector<8x16xf32>
    %cst_18 = arith.constant dense<0.000000e+00> : vector<8xf32>
    %37 = vector.multi_reduction <add>, %36, %cst_18 [1] : vector<8x16xf32> to vector<8xf32>
    %38 = vector.shape_cast %37 : vector<8xf32> to vector<8x1xf32>
    %39 = arith.addf %38, %14 : vector<8x1xf32>
    %c0_19 = arith.constant 0 : index
    %c0_20 = arith.constant 0 : index
    %40 = vector.load %arg6[%c0_19, %c0_20] : memref<8x1xf32, #tpu.memory_space<vmem>>, vector<8x1xf32>
    tpu.vector_store %arg6[%c0_19, %c0_20], %39 {strides = array<i32>} : memref<8x1xf32, #tpu.memory_space<vmem>>, vector<8x1xf32>,
    return
  }
  func.func @transform_0(%arg0: i32) -> (i32, i32) {
    %c0_i32 = arith.constant 0 : i32
    %c0_i32_0 = arith.constant 0 : i32
    return %arg0, %c0_i32 : i32, i32
  }
  func.func @transform_1(%arg0: i32) -> (i32, i32) {
    %c0_i32 = arith.constant 0 : i32
    %c0_i32_0 = arith.constant 0 : i32
    return %arg0, %c0_i32 : i32, i32
  }
  func.func @transform_2(%arg0: i32) -> (i32, i32) {
    %c0_i32 = arith.constant 0 : i32
    %c0_i32_0 = arith.constant 0 : i32
    %c0_i32_1 = arith.constant 0 : i32
    return %c0_i32, %c0_i32_0 : i32, i32
  }
  func.func @transform_3(%arg0: i32) -> (i32, i32) {
    %c0_i32 = arith.constant 0 : i32
    %c0_i32_0 = arith.constant 0 : i32
    %c0_i32_1 = arith.constant 0 : i32
    return %c0_i32, %c0_i32_0 : i32, i32
  }
  func.func @transform_4(%arg0: i32) -> (i32, i32) {
    %c0_i32 = arith.constant 0 : i32
    %c0_i32_0 = arith.constant 0 : i32
    %c0_i32_1 = arith.constant 0 : i32
    return %c0_i32, %c0_i32_0 : i32, i32
  }
  func.func @transform_5(%arg0: i32) -> (i32, i32) {
    %c0_i32 = arith.constant 0 : i32
    %c0_i32_0 = arith.constant 0 : i32
    return %arg0, %c0_i32 : i32, i32
  }
  func.func @transform_6(%arg0: i32) -> (i32, i32) {
    %c0_i32 = arith.constant 0 : i32
    %c0_i32_0 = arith.constant 0 : i32
    return %arg0, %c0_i32 : i32, i32
  }
}

</mosaic_0001>

<llo_original>
// kernel: energy_net_forward.1
$region0: #{energy_net_forward.1}
  #allocation0 [shape = 'u32[]', space=smem, size = 0x4, offset = 0x4, fixed_abs, tag = 'smem constant byte address 0x4 - core index']
  #allocation1 [shape = 'u32[72,128]{1,0:T(1,128)}', space=vmem, size = 0x9000, scoped, tag = 'internal scratch']
  %s0 = inlined_call_operand.vmem [shape: f32[8,150], index: 0, kind: input, shape index: {}]
  %s1 = inlined_call_operand.vmem [shape: f32[8,159], index: 1, kind: input, shape index: {}]
  %s2 = inlined_call_operand.hbm [shape: f32[150,159], index: 2, kind: input, shape index: {}]
  %s3 = inlined_call_operand.vmem [shape: f32[159,16], index: 3, kind: input, shape index: {}]
  %s4 = inlined_call_operand.vmem [shape: f32[2,16], index: 4, kind: input, shape index: {}]
  %s5 = inlined_call_operand.vmem [shape: f32[8,1], index: 5, kind: output, shape index: {0}]
  %s6 = inlined_call_operand.hbm [shape: f32[8,159], index: 6, kind: output, shape index: {1}]
  %7 = xla_tuple %s5, %s6
  %s8 = sld [smem:[#allocation0]]
  $region42: #{energy_net_forward.1} parent=0
    _
  %s10 = ssub.s32 1, %s8
  %s11 = scalar_select 0, %s10, %s8
  $region1: #{energy_net_forward.1} parent=0
    #allocation2 [shape = 'u8[155648]{0}', space=vmem, size = 0x26000, scoped, tag = 'input window, operand 2, single buffered']
    #allocation3 [shape = 's32[1]{0}', space=sflag, size = 0x4, scoped, tag = 'scoped memory for energy_net_forward.1']
    #allocation4 [shape = 's32[1]{0}', space=sflag, size = 0x4, scoped, tag = 'scoped memory for energy_net_forward.1']
    #allocation5 [shape = 'u8[8192]{0}', space=vmem, size = 0x2000, scoped, tag = 'output window, operand 1, single buffered']
    %12 = vsyncpa [#allocation3], 0
    %13 = vsyncpa [#allocation4], 0
    // Predicated region
    $region2: #{energy_net_forward.1} parent=1 // pred_check
      _
    $region3: #{energy_net_forward.1} parent=1 // pred_check_branch
      %15 = sbr.rel (0) target = $region5
    $region4: #{energy_net_forward.1} parent=1 // pred_region
      _
    $region5: #{energy_net_forward.1} parent=1 // pred_fallthru
      _
    // Predicated region
    $region6: #{energy_net_forward.1} parent=1 // pred_check
      _
    $region7: #{energy_net_forward.1} parent=1 // pred_check_branch
      %17 = sbr.rel (0) target = $region9
    $region8: #{energy_net_forward.1} parent=1 // pred_region
      _
    $region9: #{energy_net_forward.1} parent=1 // pred_fallthru
      _
    // Predicated region
    $region10: #{energy_net_forward.1} parent=1 // pred_check
      _
    $region11: #{energy_net_forward.1} parent=1 // pred_check_branch
      %19 = sbr.rel (0) target = $region13
    $region12: #{energy_net_forward.1} parent=1 // pred_region
      %21 = vsyncadd [#allocation3], 0
      %s22 = sshll.u32 %s2, 4
      %s23 = int_to_ptr.hbm [resolvable:$true] %s22
      %s24 = sshll.u32 [#allocation2], 4
      %s25 = int_to_ptr.vmem [resolvable:$true] %s24
      %30 = dma.hbm_to_vmem [thread:$0]  %s23, 4864, %s25, [#allocation3], 256, 256, 16
    $region13: #{energy_net_forward.1} parent=1 // pred_fallthru
      _
    // Predicated region
    $region14: #{energy_net_forward.1} parent=1 // pred_check
      _
    $region15: #{energy_net_forward.1} parent=1 // pred_check_branch
      %32 = sbr.rel (0) target = $region17
    $region16: #{energy_net_forward.1} parent=1 // pred_region
      _
    $region17: #{energy_net_forward.1} parent=1 // pred_fallthru
      _
    // Predicated region
    $region18: #{energy_net_forward.1} parent=1 // pred_check
      _
    $region19: #{energy_net_forward.1} parent=1 // pred_check_branch
      %34 = sbr.rel (0) target = $region21
    $region20: #{energy_net_forward.1} parent=1 // pred_region
      _
    $region21: #{energy_net_forward.1} parent=1 // pred_fallthru
      _
    // Predicated region
    $region22: #{energy_net_forward.1} parent=1 // pred_check
      _
    $region23: #{energy_net_forward.1} parent=1 // pred_check_branch
      %36 = sbr.rel (0) target = $region25
    $region24: #{energy_net_forward.1} parent=1 // pred_region
      %38 = dma.done [#allocation3], 4864
    $region25: #{energy_net_forward.1} parent=1 // pred_fallthru
      _
    %v39 = vld [vmem:[%s0] sm:$0xff]
    %v40 = vld [vmem:[%s0 + $0x8] sm:$0xff]
    %v41 = vld [vmem:[%s1] sm:$0xff]
    %v42 = vld [vmem:[%s1 + $0x8] sm:$0xff]
    %v43 = vld [vmem:[#allocation2] sm:$0xff]
    %v44 = vld [vmem:[#allocation2 + $0x8] sm:$0xff]
    %v45 = vld [vmem:[#allocation2 + $0x10] sm:$0xff]
    %v46 = vld [vmem:[#allocation2 + $0x18] sm:$0xff]
    %v47 = vld [vmem:[#allocation2 + $0x20] sm:$0xff]
    %v48 = vld [vmem:[#allocation2 + $0x28] sm:$0xff]
    %v49 = vld [vmem:[#allocation2 + $0x30] sm:$0xff]
    %v50 = vld [vmem:[#allocation2 + $0x38] sm:$0xff]
    %v51 = vld [vmem:[#allocation2 + $0x40] sm:$0xff]
    %v52 = vld [vmem:[#allocation2 + $0x48] sm:$0xff]
    %v53 = vld [vmem:[#allocation2 + $0x50] sm:$0xff]
    %v54 = vld [vmem:[#allocation2 + $0x58] sm:$0xff]
    %v55 = vld [vmem:[#allocation2 + $0x60] sm:$0xff]
    %v56 = vld [vmem:[#allocation2 + $0x68] sm:$0xff]
    %v57 = vld [vmem:[#allocation2 + $0x70] sm:$0xff]
    %v58 = vld [vmem:[#allocation2 + $0x78] sm:$0xff]
    %v59 = vld [vmem:[#allocation2 + $0x80] sm:$0xff]
    %v60 = vld [vmem:[#allocation2 + $0x88] sm:$0xff]
    %v61 = vld [vmem:[#allocation2 + $0x90] sm:$0xff]
    %v62 = vld [vmem:[#allocation2 + $0x98] sm:$0xff]
    %v63 = vld [vmem:[#allocation2 + $0xa0] sm:$0xff]
    %v64 = vld [vmem:[#allocation2 + $0xa8] sm:$0xff]
    %v65 = vld [vmem:[#allocation2 + $0xb0] sm:$0xff]
    %v66 = vld [vmem:[#allocation2 + $0xb8] sm:$0xff]
    %v67 = vld [vmem:[#allocation2 + $0xc0] sm:$0xff]
    %v68 = vld [vmem:[#allocation2 + $0xc8] sm:$0xff]
    %v69 = vld [vmem:[#allocation2 + $0xd0] sm:$0xff]
    %v70 = vld [vmem:[#allocation2 + $0xd8] sm:$0xff]
    %v71 = vld [vmem:[#allocation2 + $0xe0] sm:$0xff]
    %v72 = vld [vmem:[#allocation2 + $0xe8] sm:$0xff]
    %v73 = vld [vmem:[#allocation2 + $0xf0] sm:$0xff]
    %v74 = vld [vmem:[#allocation2 + $0xf8] sm:$0xff]
    %v75 = vld [vmem:[#allocation2 + $0x100] sm:$0xff]
    %v76 = vld [vmem:[#allocation2 + $0x108] sm:$0xff]
    %v77 = vld [vmem:[#allocation2 + $0x110] sm:$0xff]
    %v78 = vld [vmem:[#allocation2 + $0x118] sm:$0xff]
    %v79 = vld [vmem:[#allocation2 + $0x120] sm:$0x3f]
    %v80 = vld [vmem:[#allocation2 + $0x128] sm:$0x3f]
    %vm81 = vcmask 179200
    %v83 = vsel %vm81, %v40, 0
    %vm85 = vcmask 1045504
    %v87 = vsel %vm85, %v79, 0
    %v90 = vsel %vm85, %v80, 0
    %92 = vmatpush.msra.mxu0 %v73
    %93 = vmatpush.msra.mxu0 %v71
    %94 = vmatpush.msra.mxu0 %v69
    %95 = vmatpush.msra.mxu0 %v67
    %96 = vmatpush.msra.mxu0 %v65
    %97 = vmatpush.msra.mxu0 %v63
    %98 = vmatpush.msra.mxu0 %v61
    %99 = vmatpush.msra.mxu0 %v59
    %100 = vmatpush.msra.mxu0 %v57
    %101 = vmatpush.msra.mxu0 %v55
    %102 = vmatpush.msra.mxu0 %v53
    %103 = vmatpush.msra.mxu0 %v51
    %104 = vmatpush.msra.mxu0 %v49
    %105 = vmatpush.msra.mxu0 %v47
    %106 = vmatpush.msra.mxu0 %v45
    %107 = vmatpush.msra.mxu0 %v43
    %108 = vmatmul.f32.gmra.mxu0 %v39
    %v109 = vpop.f32.mrf.mxu0
    %v110 = vadd.f32 0.0, %v109
    %111 = vdwg.mxu0
    %112 = vmatpush.msra.mxu0 0.0
    %113 = vmatpush.msra.mxu0 0.0
    %114 = vmatpush.msra.mxu0 0.0
    %115 = vmatpush.msra.mxu0 0.0
    %116 = vmatpush.msra.mxu0 0.0
    %117 = vmatpush.msra.mxu0 0.0
    %118 = vmatpush.msra.mxu0 0.0
    %119 = vmatpush.msra.mxu0 0.0
    %120 = vmatpush.msra.mxu0 0.0
    %121 = vmatpush.msra.mxu0 0.0
    %122 = vmatpush.msra.mxu0 0.0
    %123 = vmatpush.msra.mxu0 0.0
    %124 = vmatpush.msra.mxu0 0.0
    %125 = vmatpush.msra.mxu0 %v87
    %126 = vmatpush.msra.mxu0 %v77
    %127 = vmatpush.msra.mxu0 %v75
    %128 = vmatmul.f32.gmra.mxu0 %v83
    %v129 = vpop.f32.mrf.mxu0
    %v130 = vadd.f32 %v110, %v129
    %131 = vdwg.mxu0
    %132 = vmatpush.msra.mxu0 %v74
    %133 = vmatpush.msra.mxu0 %v72
    %134 = vmatpush.msra.mxu0 %v70
    %135 = vmatpush.msra.mxu0 %v68
    %136 = vmatpush.msra.mxu0 %v66
    %137 = vmatpush.msra.mxu0 %v64
    %138 = vmatpush.msra.mxu0 %v62
    %139 = vmatpush.msra.mxu0 %v60
    %140 = vmatpush.msra.mxu0 %v58
    %141 = vmatpush.msra.mxu0 %v56
    %142 = vmatpush.msra.mxu0 %v54
    %143 = vmatpush.msra.mxu0 %v52
    %144 = vmatpush.msra.mxu0 %v50
    %145 = vmatpush.msra.mxu0 %v48
    %146 = vmatpush.msra.mxu0 %v46
    %147 = vmatpush.msra.mxu0 %v44
    %148 = vmatmul.f32.gmra.mxu0 %v39
    %v149 = vpop.f32.mrf.mxu0
    %v150 = vadd.f32 0.0, %v149
    %151 = vdwg.mxu0
    %152 = vmatpush.msra.mxu0 0.0
    %153 = vmatpush.msra.mxu0 0.0
    %154 = vmatpush.msra.mxu0 0.0
    %155 = vmatpush.msra.mxu0 0.0
    %156 = vmatpush.msra.mxu0 0.0
    %157 = vmatpush.msra.mxu0 0.0
    %158 = vmatpush.msra.mxu0 0.0
    %159 = vmatpush.msra.mxu0 0.0
    %160 = vmatpush.msra.mxu0 0.0
    %161 = vmatpush.msra.mxu0 0.0
    %162 = vmatpush.msra.mxu0 0.0
    %163 = vmatpush.msra.mxu0 0.0
    %164 = vmatpush.msra.mxu0 0.0
    %165 = vmatpush.msra.mxu0 %v90
    %166 = vmatpush.msra.mxu0 %v78
    %167 = vmatpush.msra.mxu0 %v76
    %168 = vmatmul.f32.gmra.mxu0 %v83
    %v169 = vpop.f32.mrf.mxu0
    %v170 = vadd.f32 %v150, %v169
    %171 = vdwg.mxu0
    %v172 = vsub.f32 0.0, %v130
    %v173 = vsub.f32 0.0, %v170
    %v174 = vxor.u32 %v172, 2147483648
    %v175 = vxor.u32 %v173, 2147483648
    %v176 = vmul.f32 %v174, 1.442695
    %v177 = vpow.pop %v176
    %v178 = vmul.f32 %v175, 1.442695
    %v179 = vpow.pop %v178
    %v180 = vadd.f32 %v177, 1.0
    %v181 = vadd.f32 %v179, 1.0
    %v182 = vrcp.pop %v180
    %v183 = vmul.f32 %v180, %v182
    %v184 = vsub.f32 1.0, %v183
    %v185 = vmul.f32 %v182, %v184
    %v186 = vadd.f32 %v182, %v185
    %vm187 = vweird.f32 %v180
    %vm188 = vweird.f32 %v182
    %vm189 = vmor %vm187, %vm188
    %v190 = vsel %vm189, %v182, %v186
    %v191 = vand.u32 2147483647, %v180
    %vm192 = vcmp.eq.f32.partialorder %v191, 8.507059e+37
    %v193 = vand.u32 %v180, 2147483648
    %v194 = vor.u32 1.1754944e-38, %v193
    %v195 = vsel %vm192, %v194, %v190
    %v196 = vmul.f32 1.0, %v195
    %v197 = vrcp.pop %v181
    %v198 = vmul.f32 %v181, %v197
    %v199 = vsub.f32 1.0, %v198
    %v200 = vmul.f32 %v197, %v199
    %v201 = vadd.f32 %v197, %v200
    %vm202 = vweird.f32 %v181
    %vm203 = vweird.f32 %v197
    %vm204 = vmor %vm202, %vm203
    %v205 = vsel %vm204, %v197, %v201
    %v206 = vand.u32 2147483647, %v181
    %vm207 = vcmp.eq.f32.partialorder %v206, 8.507059e+37
    %v208 = vand.u32 %v181, 2147483648
    %v209 = vor.u32 1.1754944e-38, %v208
    %v210 = vsel %vm207, %v209, %v205
    %v211 = vmul.f32 1.0, %v210
    %212 = vst [vmem:[#allocation5] sm:$0xff] %v196
    %vm213 = vcmask 252928
    %214 = vst.msk [vmem:[#allocation5 + $0x8] sm:$0xff] %vm213, %v211
    %v215 = vmul.f32 %v130, %v41
    %v216 = vmul.f32 %v170, %v42
    %v217 = vsel %vm213, %v216, 0.0
    %v218 = vadd.f32 %v215, %v217
    %219 = vadd.xlane.f32.xlu0 %v218
    %v220 = vpop.xlane.xlu0 %219
    %v221 = vld [vmem:[%s3] sm:$0xff]
    %v222 = vld [vmem:[%s3 + $0x8] sm:$0xff]
    %v223 = vld [vmem:[%s3 + $0x10] sm:$0xff]
    %v224 = vld [vmem:[%s3 + $0x18] sm:$0xff]
    %v225 = vld [vmem:[%s3 + $0x20] sm:$0xff]
    %v226 = vld [vmem:[%s3 + $0x28] sm:$0xff]
    %v227 = vld [vmem:[%s3 + $0x30] sm:$0xff]
    %v228 = vld [vmem:[%s3 + $0x38] sm:$0xff]
    %v229 = vld [vmem:[%s3 + $0x40] sm:$0xff]
    %v230 = vld [vmem:[%s3 + $0x48] sm:$0xff]
    %v231 = vld [vmem:[%s3 + $0x50] sm:$0xff]
    %v232 = vld [vmem:[%s3 + $0x58] sm:$0xff]
    %v233 = vld [vmem:[%s3 + $0x60] sm:$0xff]
    %v234 = vld [vmem:[%s3 + $0x68] sm:$0xff]
    %v235 = vld [vmem:[%s3 + $0x70] sm:$0xff]
    %v236 = vld [vmem:[%s3 + $0x78] sm:$0xff]
    %v237 = vld [vmem:[%s3 + $0x80] sm:$0xff]
    %v238 = vld [vmem:[%s3 + $0x88] sm:$0xff]
    %v239 = vld [vmem:[%s3 + $0x90] sm:$0xff]
    %v240 = vld [vmem:[%s3 + $0x98] sm:$0x7f]
    %v241 = vld [vmem:[%s4] sm:$0x1]
    %v242 = vperm.slane %v241, 0
    %v244 = vsel %vm213, %v42, 0
    %vm246 = vcmask 1046528
    %v248 = vsel %vm246, %v240, 0
    %250 = vmatpush.msra.mxu0 %v236
    %251 = vmatpush.msra.mxu0 %v235
    %252 = vmatpush.msra.mxu0 %v234
    %253 = vmatpush.msra.mxu0 %v233
    %254 = vmatpush.msra.mxu0 %v232
    %255 = vmatpush.msra.mxu0 %v231
    %256 = vmatpush.msra.mxu0 %v230
    %257 = vmatpush.msra.mxu0 %v229
    %258 = vmatpush.msra.mxu0 %v228
    %259 = vmatpush.msra.mxu0 %v227
    %260 = vmatpush.msra.mxu0 %v226
    %261 = vmatpush.msra.mxu0 %v225
    %262 = vmatpush.msra.mxu0 %v224
    %263 = vmatpush.msra.mxu0 %v223
    %264 = vmatpush.msra.mxu0 %v222
    %265 = vmatpush.msra.mxu0 %v221
    %266 = vmatmul.f32.gmra.mxu0 %v41
    %v267 = vpop.f32.mrf.mxu0
    %v268 = vadd.f32 %v242, %v267
    %269 = vdwg.mxu0
    %270 = vmatpush.msra.mxu0 0.0
    %271 = vmatpush.msra.mxu0 0.0
    %272 = vmatpush.msra.mxu0 0.0
    %273 = vmatpush.msra.mxu0 0.0
    %274 = vmatpush.msra.mxu0 0.0
    %275 = vmatpush.msra.mxu0 0.0
    %276 = vmatpush.msra.mxu0 0.0
    %277 = vmatpush.msra.mxu0 0.0
    %278 = vmatpush.msra.mxu0 0.0
    %279 = vmatpush.msra.mxu0 0.0
    %280 = vmatpush.msra.mxu0 0.0
    %281 = vmatpush.msra.mxu0 0.0
    %282 = vmatpush.msra.mxu0 %v248
    %283 = vmatpush.msra.mxu0 %v239
    %284 = vmatpush.msra.mxu0 %v238
    %285 = vmatpush.msra.mxu0 %v237
    %286 = vmatmul.f32.gmra.mxu0 %v244
    %v287 = vpop.f32.mrf.mxu0
    %v288 = vadd.f32 %v268, %v287
    %289 = vdwg.mxu0
    %v290 = vmax.f32 %v288, 0.0
    %vm291 = vcmp.ne.f32.partialorder %v288, %v288
    %v292 = vadd.f32 %v288, 0.0
    %v293 = vand.u32 2147483647, %v288
    %v294 = vsub.f32 0.0, %v293
    %v295 = vmul.f32 %v294, 1.442695
    %v296 = vpow.pop %v295
    %v297 = vadd.f32 %v296, 1.0
    %v298 = vlog2.pop %v297
    %v299 = vmul.f32 %v298, 0.6931472
    %v300 = vmul.f32 -0.5, %v296
    %v301 = vadd.f32 %v300, 1.0
    %v302 = vmul.f32 %v301, %v296
    %v303 = vand.u32 2147483647, %v296
    %vm304 = vcmp.lt.f32.partialorder %v303, 0.0004427343
    %v305 = vsel %vm304, %v302, %v299
    %v306 = vadd.f32 %v290, %v305
    %v307 = vsel %vm291, %v292, %v306
    %v308 = vld [vmem:[%s4 + $0x1] sm:$0x1]
    %v309 = vperm.slane %v308, 0
    %v310 = vmul.f32 %v307, %v309
    %vm311 = vcmask 130048
    %v312 = vsel %vm311, %v310, 0.0
    %313 = vadd.xlane.f32.xlu0 %v312
    %v314 = vpop.xlane.xlu0 %313
    %v315 = vadd.f32 %v314, %v220
    %vm316 = vcmask 7168
    %317 = vst.msk [vmem:[%s5] sm:$0xff] %vm316, %v315
    // Predicated region
    $region26: #{energy_net_forward.1} parent=1 // pred_check
      _
    $region27: #{energy_net_forward.1} parent=1 // pred_check_branch
      %319 = sbr.rel (0) target = $region29
    $region28: #{energy_net_forward.1} parent=1 // pred_region
      _
    $region29: #{energy_net_forward.1} parent=1 // pred_fallthru
      _
    // Predicated region
    $region30: #{energy_net_forward.1} parent=1 // pred_check
      _
    $region31: #{energy_net_forward.1} parent=1 // pred_check_branch
      %321 = sbr.rel (0) target = $region33
    $region32: #{energy_net_forward.1} parent=1 // pred_region
      %323 = vsyncadd [#allocation4], 0
      %s325 = sshll.u32 [#allocation5], 4
      %s326 = int_to_ptr.vmem [resolvable:$true] %s325
      %s327 = sshll.u32 %s6, 4
      %s328 = int_to_ptr.hbm [resolvable:$true] %s327
      %330 = dma.vmem_to_hbm [thread:$0]  %s326, 256, %s328, [#allocation4]
    $region33: #{energy_net_forward.1} parent=1 // pred_fallthru
      _
    // Predicated region
    $region34: #{energy_net_forward.1} parent=1 // pred_check
      _
    $region35: #{energy_net_forward.1} parent=1 // pred_check_branch
      %332 = sbr.rel (0) target = $region37
    $region36: #{energy_net_forward.1} parent=1 // pred_region
      _
    $region37: #{energy_net_forward.1} parent=1 // pred_fallthru
      _
    // Predicated region
    $region38: #{energy_net_forward.1} parent=1 // pred_check
      _
    $region39: #{energy_net_forward.1} parent=1 // pred_check_branch
      %334 = sbr.rel (0) target = $region41
    $region40: #{energy_net_forward.1} parent=1 // pred_region
      %336 = dma.done [#allocation4], 256
    $region41: #{energy_net_forward.1} parent=1 // pred_fallthru
      _
    %337 = vsyncpa [#allocation3], 1
    %338 = vsyncpa [#allocation4], 1

</llo_original>
